<compile_context>
chip_gen: v7x
topology: tpu7x:2x2x1
jax: 0.10.0
libtpu: 0.0.40
codegen_flags: <defaults>
</compile_context>

<pallas_src>
import functools

import jax
import jax.numpy as jnp
from jax.experimental import pallas as pl
from jax.experimental.pallas import tpu as pltpu


def _emd_kernel(pred_ref, target_ref, out_ref, *, r, C, TB):
    # pred_ref / target_ref: (C, TB) tile — score bins on sublanes, batch on lanes.
    d = pred_ref[...] - target_ref[...]                                # (C, TB)

    # Lower-triangular ones L[j, k] = 1 if k <= j, built in-kernel (no DMA).
    # cumsum along the C axis == L @ d  (linear, so diff-of-cdfs == cdf-of-diff).
    row = jax.lax.broadcasted_iota(jnp.int32, (C, C), 0)
    col = jax.lax.broadcasted_iota(jnp.int32, (C, C), 1)
    tri = (col <= row).astype(jnp.float32)                             # (C, C)

    cdf_diff = jnp.dot(tri, d, preferred_element_type=jnp.float32)     # (C, TB)

    if r == 2:
        # |x|**2 == x*x and mean**(1/2) == sqrt: avoids EUP pow (exp+log).
        pw = cdf_diff * cdf_diff
        samplewise = jnp.sqrt(jnp.mean(pw, axis=0, keepdims=True))     # (1, TB)
    else:
        pw = jnp.abs(cdf_diff) ** r
        samplewise = jnp.mean(pw, axis=0, keepdims=True) ** (1.0 / r)  # (1, TB)

    out_ref[...] = samplewise.reshape(1, 1, TB)


def emd_samplewise(pred, target, r=2):
    """Per-sample EMD (the reduction=None output of the PyTorch module)."""
    assert pred.shape == target.shape and pred.ndim == 2
    B, C = pred.shape
    pred = pred.astype(jnp.float32)
    target = target.astype(jnp.float32)

    # Batch tile: multiple of 128 so batch fills the lane axis; cap at 1024.
    TB = min(1024, ((B + 127) // 128) * 128)
    num_blocks = (B + TB - 1) // TB
    padded_B = num_blocks * TB

    # Transpose so batch lands on lanes; zero-pad the batch to a tile multiple.
    # Padded columns produce samplewise EMD == 0 and are sliced off below.
    pred_t = jnp.zeros((C, padded_B), jnp.float32).at[:, :B].set(pred.T)
    target_t = jnp.zeros((C, padded_B), jnp.float32).at[:, :B].set(target.T)

    kernel = functools.partial(_emd_kernel, r=r, C=C, TB=TB)

    out = pl.pallas_call(
        kernel,
        out_shape=jax.ShapeDtypeStruct((num_blocks, 1, TB), jnp.float32),
        grid=(num_blocks,),
        in_specs=[
            pl.BlockSpec((C, TB), lambda b: (0, b)),
            pl.BlockSpec((C, TB), lambda b: (0, b)),
        ],
        out_specs=pl.BlockSpec((1, 1, TB), lambda b: (b, 0, 0)),
        compiler_params=pltpu.CompilerParams(
            dimension_semantics=("parallel",),
            vmem_limit_bytes=32 * 1024 * 1024,
        ),
        cost_estimate=pl.CostEstimate(
            flops=2 * padded_B * C * C + 6 * padded_B * C,
            transcendentals=padded_B if r == 2 else 3 * padded_B * C,
            bytes_accessed=2 * padded_B * C * 4 + padded_B * 4,
        ),
    )(pred_t, target_t)

    return out.reshape(padded_B)[:B]


def emd_loss(pred, target, r=2, reduction="mean"):
    """EMD loss matching the PyTorch EMDLoss module (reduction='mean' or None)."""
    samplewise = emd_samplewise(pred, target, r=r)
    if reduction is None:
        return samplewise
    elif reduction == "mean":
        # Divide by the true batch size (not the padded one).
        return jnp.mean(samplewise)
    raise ValueError(f"unsupported reduction: {reduction!r}")


def _emd_ref(pred, target, r=2, reduction="mean"):
    cdf_pred = jnp.cumsum(pred, -1)
    cdf_target = jnp.cumsum(target, -1)
    samplewise = jnp.mean(jnp.abs(cdf_pred - cdf_target) ** r, axis=-1) ** (1.0 / r)
    if reduction is None:
        return samplewise
    return jnp.mean(samplewise)


if __name__ == "__main__":
    key = jax.random.PRNGKey(0)
    k1, k2 = jax.random.split(key)
    B, C = 8, 16  # batch of 8 score distributions over 16 bins
    # NIMA-style inputs: probability distributions over score bins.
    pred = jax.nn.softmax(jax.random.normal(k1, (B, C), dtype=jnp.float32), axis=-1)
    target = jax.nn.softmax(jax.random.normal(k2, (B, C), dtype=jnp.float32), axis=-1)

    # reduction='mean'
    loss = jax.block_until_ready(emd_loss(pred, target, r=2, reduction="mean"))
    ref = _emd_ref(pred, target, r=2, reduction="mean")
    assert jnp.allclose(loss, ref, atol=1e-5, rtol=1e-5), (loss, ref)

    # reduction=None (samplewise)
    sw = jax.block_until_ready(emd_loss(pred, target, r=2, reduction=None))
    sw_ref = _emd_ref(pred, target, r=2, reduction=None)
    assert sw.shape == (B,)
    assert jnp.allclose(sw, sw_ref, atol=1e-5, rtol=1e-5), (sw, sw_ref)

    print("KERNEL_OK")
</pallas_src>

<mosaic_0001>
module attributes {stable_mosaic.version = 11 : i64} {
  func.func @_emd_kernel(%arg0: i32, %arg1: memref<16x128xf32, #tpu.memory_space<vmem>>, %arg2: memref<16x128xf32, #tpu.memory_space<vmem>>, %arg3: memref<1x1x128xf32, #tpu.memory_space<vmem>>) attributes {dimension_semantics = [#tpu.dimension_semantics<parallel>], iteration_bounds = array<i64: 1>, scalar_prefetch = 0 : i64, scratch_operands = 0 : i64, tpu.core_type = #tpu.core_type<tc>, window_params = [{transform_indices = @transform_0, window_bounds = array<i64: 16, 128>}, {transform_indices = @transform_1, window_bounds = array<i64: 16, 128>}, {transform_indices = @transform_2, window_bounds = array<i64: 1, 1, 128>}]} {
    %c0 = arith.constant 0 : index
    %c0_0 = arith.constant 0 : index
    %0 = vector.load %arg1[%c0, %c0_0] : memref<16x128xf32, #tpu.memory_space<vmem>>, vector<16x128xf32>
    %c0_1 = arith.constant 0 : index
    %c0_2 = arith.constant 0 : index
    %1 = vector.load %arg2[%c0_1, %c0_2] : memref<16x128xf32, #tpu.memory_space<vmem>>, vector<16x128xf32>
    %2 = arith.subf %0, %1 : vector<16x128xf32>
    %3 = tpu.iota {dimensions = array<i32: 0>} : vector<16x16xi32>
    %4 = tpu.iota {dimensions = array<i32: 1>} : vector<16x16xi32>
    %5 = arith.cmpi sle, %4, %3 : vector<16x16xi32>
    %6 = arith.extui %5 : vector<16x16xi1> to vector<16x16xi32>
    %7 = arith.sitofp %6 : vector<16x16xi32> to vector<16x16xf32>
    %cst = arith.constant dense<0.000000e+00> : vector<16x128xf32>
    %8 = tpu.matmul %7, %2, %cst {dimension_numbers = #tpu.dot_dimension_numbers<[1], [0], [0], [1], [0, 0, 1, 1], [], []>} : vector<16x16xf32>, vector<16x128xf32>, vector<16x128xf32> -> vector<16x128xf32>
    %9 = arith.mulf %8, %8 : vector<16x128xf32>
    %cst_3 = arith.constant dense<0.000000e+00> : vector<128xf32>
    %10 = vector.multi_reduction <add>, %9, %cst_3 [0] : vector<16x128xf32> to vector<128xf32>
    %11 = vector.shape_cast %10 : vector<128xf32> to vector<1x128xf32>
    %cst_4 = arith.constant 1.600000e+01 : f32
    %12 = vector.broadcast %cst_4 : f32 to vector<1x128xf32>
    %13 = arith.divf %11, %12 : vector<1x128xf32>
    %14 = math.sqrt %13 : vector<1x128xf32>
    %15 = vector.shape_cast %14 : vector<1x128xf32> to vector<1x1x128xf32>
    %c0_5 = arith.constant 0 : index
    %c0_6 = arith.constant 0 : index
    %c0_7 = arith.constant 0 : index
    %16 = vector.load %arg3[%c0_5, %c0_6, %c0_7] : memref<1x1x128xf32, #tpu.memory_space<vmem>>, vector<1x1x128xf32>
    tpu.vector_store %arg3[%c0_5, %c0_6, %c0_7], %15 {strides = array<i32>} : memref<1x1x128xf32, #tpu.memory_space<vmem>>, vector<1x1x128xf32>,
    return
  }
  func.func @transform_0(%arg0: i32) -> (i32, i32) {
    %c0_i32 = arith.constant 0 : i32
    %c0_i32_0 = arith.constant 0 : i32
    return %c0_i32, %arg0 : i32, i32
  }
  func.func @transform_1(%arg0: i32) -> (i32, i32) {
    %c0_i32 = arith.constant 0 : i32
    %c0_i32_0 = arith.constant 0 : i32
    return %c0_i32, %arg0 : i32, i32
  }
  func.func @transform_2(%arg0: i32) -> (i32, i32, i32) {
    %c0_i32 = arith.constant 0 : i32
    %c0_i32_0 = arith.constant 0 : i32
    %c0_i32_1 = arith.constant 0 : i32
    return %arg0, %c0_i32, %c0_i32_0 : i32, i32, i32
  }
}

</mosaic_0001>

<llo_original>
// kernel: tpu_custom_call.1
$region0: #{tpu_custom_call.1}
  #allocation0 [shape = 'u32[]', space=smem, size = 0x4, offset = 0x4, fixed_abs, tag = 'smem constant byte address 0x4 - core index']
  #allocation1 [shape = 'u32[144,128]{1,0:T(1,128)}', space=vmem, size = 0x12000, scoped, tag = 'internal scratch']
  %s0 = inlined_call_operand.hbm [shape: f32[16,128], index: 0, kind: input, shape index: {}]
  %s1 = inlined_call_operand.hbm [shape: f32[16,128], index: 1, kind: input, shape index: {}]
  %s2 = inlined_call_operand.hbm [shape: f32[1,1,128], index: 2, kind: output, shape index: {}]
  %s3 = sld [smem:[#allocation0]]
  $region26: #{tpu_custom_call.1} parent=0
    _
  %s5 = ssub.s32 1, %s3
  %s6 = scalar_select 0, %s5, %s3
  $region1: #{tpu_custom_call.1} parent=0
    #allocation2 [shape = 'u8[8192]{0}', space=vmem, size = 0x2000, scoped, tag = 'input window, operand 0, single buffered']
    #allocation3 [shape = 's32[1]{0}', space=sflag, size = 0x4, scoped, tag = 'scoped memory for tpu_custom_call.1']
    #allocation4 [shape = 's32[1]{0}', space=sflag, size = 0x4, scoped, tag = 'scoped memory for tpu_custom_call.1']
    #allocation5 [shape = 'u8[8192]{0}', space=vmem, size = 0x2000, scoped, tag = 'input window, operand 1, single buffered']
    #allocation6 [shape = 's32[1]{0}', space=sflag, size = 0x4, scoped, tag = 'scoped memory for tpu_custom_call.1']
    #allocation7 [shape = 'u8[512]{0}', space=vmem, size = 0x400, scoped, tag = 'output window, operand 0, single buffered']
    %7 = vsyncpa [#allocation3], 0
    %8 = vsyncpa [#allocation6], 0
    %9 = vsyncpa [#allocation4], 0
    // Predicated region
    $region2: #{tpu_custom_call.1} parent=1 // pred_check
      _
    $region3: #{tpu_custom_call.1} parent=1 // pred_check_branch
      %11 = sbr.rel (0) target = $region5
    $region4: #{tpu_custom_call.1} parent=1 // pred_region
      %s13 = ssub.s32 256, 256
      %14 = vsyncadd [#allocation3], %s13
      %s15 = sshll.u32 [#allocation2], 4
      %s16 = int_to_ptr.vmem [resolvable:$true] %s15
      %21 = dma.hbm_to_vmem [thread:$0]  %s0, 256, %s16, [#allocation3], 128, 128, 8
    $region5: #{tpu_custom_call.1} parent=1 // pred_fallthru
      _
    // Predicated region
    $region6: #{tpu_custom_call.1} parent=1 // pred_check
      _
    $region7: #{tpu_custom_call.1} parent=1 // pred_check_branch
      %23 = sbr.rel (0) target = $region9
    $region8: #{tpu_custom_call.1} parent=1 // pred_region
      %s25 = ssub.s32 256, 256
      %26 = vsyncadd [#allocation6], %s25
      %s27 = sshll.u32 [#allocation5], 4
      %s28 = int_to_ptr.vmem [resolvable:$true] %s27
      %33 = dma.hbm_to_vmem [thread:$0]  %s1, 256, %s28, [#allocation6], 128, 128, 8
    $region9: #{tpu_custom_call.1} parent=1 // pred_fallthru
      _
    // Predicated region
    $region10: #{tpu_custom_call.1} parent=1 // pred_check
      _
    $region11: #{tpu_custom_call.1} parent=1 // pred_check_branch
      %35 = sbr.rel (0) target = $region13
    $region12: #{tpu_custom_call.1} parent=1 // pred_region
      %36 = dma.done [#allocation3], 256
    $region13: #{tpu_custom_call.1} parent=1 // pred_fallthru
      _
    // Predicated region
    $region14: #{tpu_custom_call.1} parent=1 // pred_check
      _
    $region15: #{tpu_custom_call.1} parent=1 // pred_check_branch
      %38 = sbr.rel (0) target = $region17
    $region16: #{tpu_custom_call.1} parent=1 // pred_region
      %39 = dma.done [#allocation6], 256
    $region17: #{tpu_custom_call.1} parent=1 // pred_fallthru
      _
    %v40 = vld [vmem:[#allocation2] sm:$0xff]
    %v41 = vld [vmem:[#allocation2 + $0x8] sm:$0xff]
    %v42 = vld [vmem:[#allocation5] sm:$0xff]
    %v43 = vld [vmem:[#allocation5 + $0x8] sm:$0xff]
    %v44 = vsub.f32 %v40, %v42
    %v45 = vsub.f32 %v41, %v43
    %v46 = vlaneseq
    %v47 = vshrl.u32 %v46, 7
    %v48 = vadd.s32 %v47, 8
    %v49 = vlaneseq
    %v50 = vand.u32 %v49, 127
    %vm51 = vcmp.le.s32.totalorder %v50, %v47
    %vm52 = vcmp.le.s32.totalorder %v50, %v48
    %v53 = vsel %vm51, 1, 0
    %v54 = vsel %vm52, 1, 0
    %v55 = vcvt.s32.f32 %v53
    %v56 = vcvt.s32.f32 %v54
    %vm57 = vcmask 130048
    %v59 = vsel %vm57, %v55, 0
    %v62 = vsel %vm57, %v56, 0
    %64 = vmatprep.subr.mxu0 0.0
    %65 = vmatpush1.msra.mxu0 %v44
    %66 = vmatprep.subr.mxu0 0.0
    %67 = vmatpush1.msra.mxu0 %v45
    %68 = vmatprep.subr.mxu0 0.0
    %69 = vmatpush1.msra.mxu0 0.0
    %70 = vmatprep.subr.mxu0 0.0
    %71 = vmatpush1.msra.mxu0 0.0
    %72 = vmatprep.subr.mxu0 0.0
    %73 = vmatpush1.msra.mxu0 0.0
    %74 = vmatprep.subr.mxu0 0.0
    %75 = vmatpush1.msra.mxu0 0.0
    %76 = vmatprep.subr.mxu0 0.0
    %77 = vmatpush1.msra.mxu0 0.0
    %78 = vmatprep.subr.mxu0 0.0
    %79 = vmatpush1.msra.mxu0 0.0
    %80 = vmatprep.subr.mxu0 0.0
    %81 = vmatpush1.msra.mxu0 0.0
    %82 = vmatprep.subr.mxu0 0.0
    %83 = vmatpush1.msra.mxu0 0.0
    %84 = vmatprep.subr.mxu0 0.0
    %85 = vmatpush1.msra.mxu0 0.0
    %86 = vmatprep.subr.mxu0 0.0
    %87 = vmatpush1.msra.mxu0 0.0
    %88 = vmatprep.subr.mxu0 0.0
    %89 = vmatpush1.msra.mxu0 0.0
    %90 = vmatprep.subr.mxu0 0.0
    %91 = vmatpush1.msra.mxu0 0.0
    %92 = vmatprep.subr.mxu0 0.0
    %93 = vmatpush1.msra.mxu0 0.0
    %94 = vmatprep.subr.mxu0 0.0
    %95 = vmatpush1.msra.mxu0 0.0
    %96 = vmatprep.subr.mxu0 0.0
    %97 = vmatpush1.msra.mxu0 0.0
    %98 = vmatprep.subr.mxu0 0.0
    %99 = vmatpush1.msra.mxu0 0.0
    %100 = vmatprep.subr.mxu0 0.0
    %101 = vmatpush1.msra.mxu0 0.0
    %102 = vmatprep.subr.mxu0 0.0
    %103 = vmatpush1.msra.mxu0 0.0
    %104 = vmatprep.subr.mxu0 0.0
    %105 = vmatpush1.msra.mxu0 0.0
    %106 = vmatprep.subr.mxu0 0.0
    %107 = vmatpush1.msra.mxu0 0.0
    %108 = vmatprep.subr.mxu0 0.0
    %109 = vmatpush1.msra.mxu0 0.0
    %110 = vmatprep.subr.mxu0 0.0
    %111 = vmatpush1.msra.mxu0 0.0
    %112 = vmatprep.subr.mxu0 0.0
    %113 = vmatpush1.msra.mxu0 0.0
    %114 = vmatprep.subr.mxu0 0.0
    %115 = vmatpush1.msra.mxu0 0.0
    %116 = vmatprep.subr.mxu0 0.0
    %117 = vmatpush1.msra.mxu0 0.0
    %118 = vmatprep.subr.mxu0 0.0
    %119 = vmatpush1.msra.mxu0 0.0
    %120 = vmatprep.subr.mxu0 0.0
    %121 = vmatpush1.msra.mxu0 0.0
    %122 = vmatprep.subr.mxu0 0.0
    %123 = vmatpush1.msra.mxu0 0.0
    %124 = vmatprep.subr.mxu0 0.0
    %125 = vmatpush1.msra.mxu0 0.0
    %126 = vmatprep.subr.mxu0 0.0
    %127 = vmatpush1.msra.mxu0 0.0
    %128 = vmatprep.mubr.f32.mxu0 0.0
    %129 = vmatmul.mubr.f32.gmra.mrb[0].mxu0 %v59
    %v130 = vpop.f32.mrb[0].mxu0
    %v131 = vadd.f32 0.0, %v130
    %v132 = vpop.f32.mrb[0].mxu0
    %133 = vmatprep.mubr.f32.mxu0 0.0
    %134 = vmatmul.mubr.f32.gmra.mrb[0].mxu0 %v62
    %v135 = vpop.f32.mrb[0].mxu0
    %v136 = vadd.f32 0.0, %v135
    %v137 = vpop.f32.mrb[0].mxu0
    %138 = vdwg.mxu0
    %v139 = vmul.f32 %v131, %v131
    %v140 = vmul.f32 %v136, %v136
    %v141 = vadd.f32 %v139, %v140
    %v142 = vrot.slane %v141, 4
    %v143 = vadd.f32 %v141, %v142
    %v144 = vrot.slane %v143, 2
    %v145 = vadd.f32 %v143, %v144
    %v146 = vrot.slane %v145, 1
    %v147 = vadd.f32 %v145, %v146
    %v148 = vrcp.pop 16.0
    %v149 = vmul.f32 %v147, %v148
    %v150 = vrsqrt.pop %v149
    %v151 = vmul.f32 %v149, %v150
    %vm152 = vcmp.eq.f32.partialorder %v149, inf
    %v153 = vsel %vm152, %v149, %v151
    %vm154 = vcmp.eq.f32.partialorder %v149, 0.0
    %v155 = vand.u32 %v149, 2147483648
    %v156 = vsel %vm154, %v155, %v153
    %157 = vst [vmem:[#allocation7] sm:$0x1] %v156
    // Predicated region
    $region18: #{tpu_custom_call.1} parent=1 // pred_check
      _
    $region19: #{tpu_custom_call.1} parent=1 // pred_check_branch
      %159 = sbr.rel (0) target = $region21
    $region20: #{tpu_custom_call.1} parent=1 // pred_region
      %s161 = ssub.s32 16, 16
      %162 = vsyncadd [#allocation4], %s161
      %s164 = sshll.u32 [#allocation7], 4
      %s165 = int_to_ptr.vmem [resolvable:$true] %s164
      %167 = dma.vmem_to_hbm [thread:$0]  %s165, 16, %s2, [#allocation4]
    $region21: #{tpu_custom_call.1} parent=1 // pred_fallthru
      _
    // Predicated region
    $region22: #{tpu_custom_call.1} parent=1 // pred_check
      _
    $region23: #{tpu_custom_call.1} parent=1 // pred_check_branch
      %169 = sbr.rel (0) target = $region25
    $region24: #{tpu_custom_call.1} parent=1 // pred_region
      %170 = dma.done [#allocation4], 16
    $region25: #{tpu_custom_call.1} parent=1 // pred_fallthru
      _
    %171 = vsyncpa [#allocation3], 1
    %172 = vsyncpa [#allocation6], 1
    %173 = vsyncpa [#allocation4], 1

</llo_original>
